<compile_context>
chip_gen: v7x
topology: tpu7x:2x2x1
jax: 0.10.0
libtpu: 0.0.40
codegen_flags: <defaults>
</compile_context>

<pallas_src>
import functools
import math

import jax
import jax.numpy as jnp
from jax.experimental import pallas as pl
from jax.experimental.pallas import tpu as pltpu


def _round_up(n, m):
    return ((n + m - 1) // m) * m


def _resnet_coupling_kernel(x_ref, *rest, d1, reverse, swap, nonlinearity, has_logpx):
    if has_logpx:
        (logpx_ref, w1_ref, b1_ref, w2_ref, b2_ref, w3_ref, b3_ref,
         y_ref, logpx_out_ref) = rest
    else:
        (w1_ref, b1_ref, w2_ref, b2_ref, w3_ref, b3_ref, y_ref) = rest
        logpx_ref = logpx_out_ref = None

    x = x_ref[...].astype(jnp.float32)          # (d, TILE_B) feature-major (lane-dense)
    d = x.shape[0]
    d2 = d - d1

    # Conditioning half x1 (d1 rows) / transformed half x2 (d2 rows).
    # Swap == column rotation in the PyTorch module; done here with static slices.
    if not swap:
        x1 = x[:d1, :]
        x2 = x[d1:, :]
    else:
        if d1 == d2:                            # even d: pure static slices, no temporaries
            x1 = x[d1:, :]
            x2 = x[:d2, :]
        else:                                   # odd d corner: tiny concat fallback
            xs = jnp.concatenate([x[d1:, :], x[:d1, :]], axis=0)
            x1 = xs[:d1, :]
            x2 = xs[d1:, :]

    if nonlinearity == "tanh":
        act = jnp.tanh
    else:                                       # ReLU (module default)
        act = lambda v: jnp.maximum(v, 0.0)

    # Fused s/t MLP, feature-major: weights in PyTorch (out, in) layout, batch on MXU N dim.
    h = act(jnp.dot(w1_ref[...], x1, preferred_element_type=jnp.float32) + b1_ref[...])
    h = act(jnp.dot(w2_ref[...], h, preferred_element_type=jnp.float32) + b2_ref[...])
    s_t = jnp.dot(w3_ref[...], h, preferred_element_type=jnp.float32) + b3_ref[...]  # (2*d2, TILE_B)

    scale = jnp.tanh(s_t[:d2, :]) + 1.0         # strictly positive
    shift = s_t[d2:, :]

    logdetjac = jnp.sum(jnp.log(scale), axis=0, keepdims=True)   # (1, TILE_B), lane-dense

    if not reverse:
        y1 = x2 * scale + shift
        delta_logp = logdetjac
    else:
        y1 = (x2 - shift) * pl.reciprocal(scale, approx=False)   # EUP reciprocal, not a divide
        delta_logp = -logdetjac

    # Write the two halves directly into the output ref (no concat temporaries).
    if not swap:
        y_ref[:d1, :] = x1.astype(y_ref.dtype)
        y_ref[d1:, :] = y1.astype(y_ref.dtype)
    else:
        y_ref[:d2, :] = y1.astype(y_ref.dtype)
        y_ref[d2:, :] = x1.astype(y_ref.dtype)

    if has_logpx:
        logpx_out_ref[...] = (logpx_ref[...] + delta_logp).astype(logpx_out_ref.dtype)


def resnet_coupling_layer(x, params, logpx=None, *, reverse=False, swap=False,
                          nonlinearity="relu", tile_b=8192):
    """Pallas-backed forward of ResNetCouplingLayer.

    x:      (B, d) float32 (batch-major, as the PyTorch module expects)
    params: dict with w1,b1,w2,b2,w3,b3 in PyTorch layout: w* = (out, in), b* = (out, 1)
    logpx:  optional (B, 1) float32
    Returns y (and logpx + delta_logp when logpx is given), matching the PyTorch module.
    """
    B, d = x.shape
    d1 = d - d // 2
    d2 = d - d1
    H = params["w1"].shape[0]

    has_logpx = logpx is not None

    # Feature-major (lane-dense) layout: batch maps to the 128-lane axis.
    x_t = x.T                                                     # (d, B)
    logpx_t = None
    if has_logpx:
        logpx_t = jnp.reshape(logpx.astype(jnp.float32), (1, B))  # (1, B)

    # Tile the batch (lane) axis. Large tiles amortize per-step pipeline overhead; keep
    # >= 2 grid steps when possible so v7x's second TensorCore is engaged.
    Bp0 = _round_up(B, 128)
    tile = min(_round_up(tile_b, 128), Bp0)
    if tile >= Bp0 and Bp0 >= 256:
        tile = _round_up(Bp0 // 2, 128)
    Bp = _round_up(B, tile)

    if Bp != B:
        x_t = jnp.pad(x_t, ((0, 0), (0, Bp - B)))
        if has_logpx:
            logpx_t = jnp.pad(logpx_t, ((0, 0), (0, Bp - B)))

    grid = (Bp // tile,)

    weight_args = (params["w1"], params["b1"],
                   params["w2"], params["b2"],
                   params["w3"], params["b3"])

    def batch_tiled(rows):
        # Tile only the lane (batch) axis; feature axis is the full array dim.
        return pl.BlockSpec((rows, tile), lambda i: (0, i))

    def resident(arr):
        # Weights/biases: same (0, 0) block every grid step -> stay VMEM-resident.
        return pl.BlockSpec(arr.shape, lambda i, _nd=arr.ndim: (0,) * _nd)

    in_specs = [batch_tiled(d)]
    operands = [x_t]
    io_aliases = {}
    if has_logpx:
        in_specs.append(batch_tiled(1))
        operands.append(logpx_t)
        # Alias the (wrapper-created, already reshaped/padded) logpx temp to the output;
        # never donates the caller's buffer.
        io_aliases = {1: 1}
        out_shape = (jax.ShapeDtypeStruct((d, Bp), x.dtype),
                     jax.ShapeDtypeStruct((1, Bp), jnp.float32))
        out_specs = (batch_tiled(d), batch_tiled(1))
    else:
        out_shape = jax.ShapeDtypeStruct((d, Bp), x.dtype)
        out_specs = batch_tiled(d)
    in_specs += [resident(a) for a in weight_args]
    operands += list(weight_args)

    # Advisory cost estimate for XLA scheduling around this small custom call.
    flops = 2 * Bp * (d1 * H + H * H + H * 2 * d2) + 8 * Bp * d
    transcendentals = Bp * (2 * d2 + (2 * H if nonlinearity == "tanh" else 0))
    bytes_accessed = 4 * (2 * Bp * d + (2 * Bp if has_logpx else 0)
                          + d1 * H + H * H + 2 * H * d2 + 2 * H + 2 * d2)

    kernel = functools.partial(
        _resnet_coupling_kernel,
        d1=d1, reverse=reverse, swap=swap, nonlinearity=nonlinearity,
        has_logpx=has_logpx)

    result = pl.pallas_call(
        kernel,
        out_shape=out_shape,
        grid=grid,
        in_specs=in_specs,
        out_specs=out_specs,
        input_output_aliases=io_aliases,
        compiler_params=pltpu.CompilerParams(
            dimension_semantics=("parallel",)),
        cost_estimate=pl.CostEstimate(flops=flops,
                                      transcendentals=transcendentals,
                                      bytes_accessed=bytes_accessed),
    )(*operands)

    if has_logpx:
        y_t, logpx_out_t = result
        y = y_t[:, :B].T
        logpx_out = jnp.reshape(logpx_out_t[:, :B], (B, 1))
        return y, logpx_out
    else:
        y_t = result
        return y_t[:, :B].T


# ---------------------------------------------------------------------------
# Deterministic parameter construction (analogue of the module's init):
# xavier_uniform with gain = calculate_gain('linear') / 10 = 0.1 on weights,
# torch.nn.Linear default U(-1/sqrt(fan_in), 1/sqrt(fan_in)) on biases.
# Weights in PyTorch layout: (out_dim, in_dim); biases as (out_dim, 1).
# ---------------------------------------------------------------------------
def _xavier_uniform(key, out_dim, in_dim, gain):
    a = gain * math.sqrt(6.0 / (in_dim + out_dim))
    return jax.random.uniform(key, (out_dim, in_dim), jnp.float32, -a, a)


def make_params(key, d, intermediate_dim=64):
    d1 = d - d // 2
    d2 = d - d1
    layer_dims = [(d1, intermediate_dim),
                  (intermediate_dim, intermediate_dim),
                  (intermediate_dim, 2 * d2)]
    gain = 1.0 / 10.0
    keys = jax.random.split(key, 2 * len(layer_dims))
    params = {}
    for idx, (di, do) in enumerate(layer_dims, start=1):
        kw, kb = keys[2 * (idx - 1)], keys[2 * (idx - 1) + 1]
        params[f"w{idx}"] = _xavier_uniform(kw, do, di, gain)
        kbound = 1.0 / math.sqrt(di)
        params[f"b{idx}"] = jax.random.uniform(kb, (do, 1), jnp.float32, -kbound, kbound)
    return params


def _reference_forward(x, params, logpx, *, reverse=False, swap=False, nonlinearity="relu"):
    # Pure-JAX mirror of the PyTorch module (for correctness check).
    B, d = x.shape
    d1 = d - d // 2
    d2 = d - d1
    if swap:
        x = jnp.concatenate([x[:, d1:], x[:, :d1]], axis=1)
    act = jnp.tanh if nonlinearity == "tanh" else jax.nn.relu
    x1 = x[:, :d1]
    h = act(x1 @ params["w1"].T + params["b1"].T)
    h = act(h @ params["w2"].T + params["b2"].T)
    s_t = h @ params["w3"].T + params["b3"].T
    scale = jnp.tanh(s_t[:, :d2]) + 1.0
    shift = s_t[:, d2:]
    logdetjac = jnp.sum(jnp.log(scale), axis=1, keepdims=True)
    if not reverse:
        y1 = x[:, d1:] * scale + shift
        delta_logp = logdetjac
    else:
        y1 = (x[:, d1:] - shift) / scale
        delta_logp = -logdetjac
    y = jnp.concatenate([x1, y1], axis=1) if not swap else jnp.concatenate([y1, x1], axis=1)
    return y, logpx + delta_logp


if __name__ == "__main__":
    B, d, H = 256, 8, 64        # small shapes consistent with the module (intermediate_dim=64)

    root = jax.random.PRNGKey(0)
    kx, klp, kp = jax.random.split(root, 3)

    x = jax.random.normal(kx, (B, d), jnp.float32)
    logpx = jax.random.normal(klp, (B, 1), jnp.float32)
    params = make_params(kp, d, H)

    # References computed first (pure JAX).
    y_ref, lp_ref = _reference_forward(x, params, logpx, reverse=False, swap=False)
    yr_ref, lpr_ref = _reference_forward(x, params, logpx, reverse=True, swap=True)

    # Forward path.
    y, lp = resnet_coupling_layer(x, params, logpx, reverse=False, swap=False)
    jax.block_until_ready((y, lp))
    assert jnp.allclose(y, y_ref, atol=1e-4, rtol=1e-4)
    assert jnp.allclose(lp, lp_ref, atol=1e-4, rtol=1e-4)

    # Reverse + swap path.
    yr, lpr = resnet_coupling_layer(x, params, logpx, reverse=True, swap=True)
    jax.block_until_ready((yr, lpr))
    assert jnp.allclose(yr, yr_ref, atol=1e-4, rtol=1e-4)
    assert jnp.allclose(lpr, lpr_ref, atol=1e-4, rtol=1e-4)

    # logpx=None path returns only y and carries no logpx streams at all.
    y_only = resnet_coupling_layer(x, params, None, reverse=False, swap=False)
    jax.block_until_ready(y_only)
    assert jnp.allclose(y_only, y_ref, atol=1e-4, rtol=1e-4)

    # Batch that needs lane padding (B not a multiple of 128).
    Bo = 200
    xo = jax.random.normal(jax.random.PRNGKey(1), (Bo, d), jnp.float32)
    lpo = jax.random.normal(jax.random.PRNGKey(2), (Bo, 1), jnp.float32)
    yo_ref, lpo_ref = _reference_forward(xo, params, lpo, reverse=True, swap=False)
    yo, lpo_out = resnet_coupling_layer(xo, params, lpo, reverse=True, swap=False)
    jax.block_until_ready((yo, lpo_out))
    assert jnp.allclose(yo, yo_ref, atol=1e-4, rtol=1e-4)
    assert jnp.allclose(lpo_out, lpo_ref, atol=1e-4, rtol=1e-4)

    print("KERNEL_OK")
</pallas_src>

<mosaic_0001>
module attributes {stable_mosaic.version = 11 : i64} {
  func.func @_resnet_coupling_kernel(%arg0: i32, %arg1: memref<8x128xf32, #tpu.memory_space<vmem>>, %arg2: memref<1x128xf32, #tpu.memory_space<vmem>>, %arg3: memref<64x4xf32, #tpu.memory_space<vmem>>, %arg4: memref<64x1xf32, #tpu.memory_space<vmem>>, %arg5: memref<64x64xf32, #tpu.memory_space<vmem>>, %arg6: memref<64x1xf32, #tpu.memory_space<vmem>>, %arg7: memref<8x64xf32, #tpu.memory_space<vmem>>, %arg8: memref<8x1xf32, #tpu.memory_space<vmem>>, %arg9: memref<8x128xf32, #tpu.memory_space<vmem>>, %arg10: memref<1x128xf32, #tpu.memory_space<vmem>>) attributes {dimension_semantics = [#tpu.dimension_semantics<parallel>], iteration_bounds = array<i64: 2>, scalar_prefetch = 0 : i64, scratch_operands = 0 : i64, tpu.core_type = #tpu.core_type<tc>, window_params = [{transform_indices = @transform_0, window_bounds = array<i64: 8, 128>}, {transform_indices = @transform_1, window_bounds = array<i64: 1, 128>}, {pipeline_mode = #tpu.pipeline_mode<synchronous>, transform_indices = @transform_2, window_bounds = array<i64: 64, 4>}, {pipeline_mode = #tpu.pipeline_mode<synchronous>, transform_indices = @transform_3, window_bounds = array<i64: 64, 1>}, {pipeline_mode = #tpu.pipeline_mode<synchronous>, transform_indices = @transform_4, window_bounds = array<i64: 64, 64>}, {pipeline_mode = #tpu.pipeline_mode<synchronous>, transform_indices = @transform_5, window_bounds = array<i64: 64, 1>}, {pipeline_mode = #tpu.pipeline_mode<synchronous>, transform_indices = @transform_6, window_bounds = array<i64: 8, 64>}, {pipeline_mode = #tpu.pipeline_mode<synchronous>, transform_indices = @transform_7, window_bounds = array<i64: 8, 1>}, {transform_indices = @transform_8, window_bounds = array<i64: 8, 128>}, {transform_indices = @transform_9, window_bounds = array<i64: 1, 128>}]} {
    %c0 = arith.constant 0 : index
    %c0_0 = arith.constant 0 : index
    %0 = vector.load %arg1[%c0, %c0_0] : memref<8x128xf32, #tpu.memory_space<vmem>>, vector<8x128xf32>
    %1 = vector.extract_strided_slice %0 {offsets = [0, 0], sizes = [4, 128], strides = [1, 1]} : vector<8x128xf32> to vector<4x128xf32>
    %2 = vector.extract_strided_slice %0 {offsets = [4, 0], sizes = [4, 128], strides = [1, 1]} : vector<8x128xf32> to vector<4x128xf32>
    %c0_1 = arith.constant 0 : index
    %c0_2 = arith.constant 0 : index
    %3 = vector.load %arg3[%c0_1, %c0_2] : memref<64x4xf32, #tpu.memory_space<vmem>>, vector<64x4xf32>
    %cst = arith.constant dense<0.000000e+00> : vector<64x128xf32>
    %4 = tpu.matmul %3, %1, %cst {dimension_numbers = #tpu.dot_dimension_numbers<[1], [0], [0], [1], [0, 0, 1, 1], [], []>} : vector<64x4xf32>, vector<4x128xf32>, vector<64x128xf32> -> vector<64x128xf32>
    %c0_3 = arith.constant 0 : index
    %c0_4 = arith.constant 0 : index
    %5 = vector.load %arg4[%c0_3, %c0_4] : memref<64x1xf32, #tpu.memory_space<vmem>>, vector<64x1xf32>
    %6 = vector.broadcast %5 : vector<64x1xf32> to vector<64x128xf32>
    %7 = arith.addf %4, %6 : vector<64x128xf32>
    %cst_5 = arith.constant 0.000000e+00 : f32
    %8 = vector.broadcast %cst_5 : f32 to vector<64x128xf32>
    %9 = arith.maximumf %7, %8 : vector<64x128xf32>
    %c0_6 = arith.constant 0 : index
    %c0_7 = arith.constant 0 : index
    %10 = vector.load %arg5[%c0_6, %c0_7] : memref<64x64xf32, #tpu.memory_space<vmem>>, vector<64x64xf32>
    %cst_8 = arith.constant dense<0.000000e+00> : vector<64x128xf32>
    %11 = tpu.matmul %10, %9, %cst_8 {dimension_numbers = #tpu.dot_dimension_numbers<[1], [0], [0], [1], [0, 0, 1, 1], [], []>} : vector<64x64xf32>, vector<64x128xf32>, vector<64x128xf32> -> vector<64x128xf32>
    %c0_9 = arith.constant 0 : index
    %c0_10 = arith.constant 0 : index
    %12 = vector.load %arg6[%c0_9, %c0_10] : memref<64x1xf32, #tpu.memory_space<vmem>>, vector<64x1xf32>
    %13 = vector.broadcast %12 : vector<64x1xf32> to vector<64x128xf32>
    %14 = arith.addf %11, %13 : vector<64x128xf32>
    %cst_11 = arith.constant 0.000000e+00 : f32
    %15 = vector.broadcast %cst_11 : f32 to vector<64x128xf32>
    %16 = arith.maximumf %14, %15 : vector<64x128xf32>
    %c0_12 = arith.constant 0 : index
    %c0_13 = arith.constant 0 : index
    %17 = vector.load %arg7[%c0_12, %c0_13] : memref<8x64xf32, #tpu.memory_space<vmem>>, vector<8x64xf32>
    %cst_14 = arith.constant dense<0.000000e+00> : vector<8x128xf32>
    %18 = tpu.matmul %17, %16, %cst_14 {dimension_numbers = #tpu.dot_dimension_numbers<[1], [0], [0], [1], [0, 0, 1, 1], [], []>} : vector<8x64xf32>, vector<64x128xf32>, vector<8x128xf32> -> vector<8x128xf32>
    %c0_15 = arith.constant 0 : index
    %c0_16 = arith.constant 0 : index
    %19 = vector.load %arg8[%c0_15, %c0_16] : memref<8x1xf32, #tpu.memory_space<vmem>>, vector<8x1xf32>
    %20 = vector.broadcast %19 : vector<8x1xf32> to vector<8x128xf32>
    %21 = arith.addf %18, %20 : vector<8x128xf32>
    %22 = vector.extract_strided_slice %21 {offsets = [0, 0], sizes = [4, 128], strides = [1, 1]} : vector<8x128xf32> to vector<4x128xf32>
    %23 = math.tanh %22 : vector<4x128xf32>
    %cst_17 = arith.constant 1.000000e+00 : f32
    %24 = vector.broadcast %cst_17 : f32 to vector<4x128xf32>
    %25 = arith.addf %23, %24 : vector<4x128xf32>
    %26 = vector.extract_strided_slice %21 {offsets = [4, 0], sizes = [4, 128], strides = [1, 1]} : vector<8x128xf32> to vector<4x128xf32>
    %27 = math.log %25 : vector<4x128xf32>
    %cst_18 = arith.constant dense<0.000000e+00> : vector<128xf32>
    %28 = vector.multi_reduction <add>, %27, %cst_18 [0] : vector<4x128xf32> to vector<128xf32>
    %29 = vector.shape_cast %28 : vector<128xf32> to vector<1x128xf32>
    %30 = arith.mulf %2, %25 : vector<4x128xf32>
    %31 = arith.addf %30, %26 : vector<4x128xf32>
    %c0_19 = arith.constant 0 : index
    %c0_20 = arith.constant 0 : index
    %32 = vector.load %arg9[%c0_19, %c0_20] : memref<8x128xf32, #tpu.memory_space<vmem>>, vector<4x128xf32>
    tpu.vector_store %arg9[%c0_19, %c0_20], %1 {strides = array<i32>} : memref<8x128xf32, #tpu.memory_space<vmem>>, vector<4x128xf32>,
    %c4 = arith.constant 4 : index
    %c0_21 = arith.constant 0 : index
    %33 = vector.load %arg9[%c4, %c0_21] : memref<8x128xf32, #tpu.memory_space<vmem>>, vector<4x128xf32>
    tpu.vector_store %arg9[%c4, %c0_21], %31 {strides = array<i32>} : memref<8x128xf32, #tpu.memory_space<vmem>>, vector<4x128xf32>,
    %c0_22 = arith.constant 0 : index
    %c0_23 = arith.constant 0 : index
    %34 = vector.load %arg2[%c0_22, %c0_23] : memref<1x128xf32, #tpu.memory_space<vmem>>, vector<1x128xf32>
    %35 = arith.addf %34, %29 : vector<1x128xf32>
    %c0_24 = arith.constant 0 : index
    %c0_25 = arith.constant 0 : index
    %36 = vector.load %arg10[%c0_24, %c0_25] : memref<1x128xf32, #tpu.memory_space<vmem>>, vector<1x128xf32>
    tpu.vector_store %arg10[%c0_24, %c0_25], %35 {strides = array<i32>} : memref<1x128xf32, #tpu.memory_space<vmem>>, vector<1x128xf32>,
    return
  }
  func.func @transform_0(%arg0: i32) -> (i32, i32) {
    %c0_i32 = arith.constant 0 : i32
    %c0_i32_0 = arith.constant 0 : i32
    return %c0_i32, %arg0 : i32, i32
  }
  func.func @transform_1(%arg0: i32) -> (i32, i32) {
    %c0_i32 = arith.constant 0 : i32
    %c0_i32_0 = arith.constant 0 : i32
    return %c0_i32, %arg0 : i32, i32
  }
  func.func @transform_2(%arg0: i32) -> (i32, i32) {
    %c0_i32 = arith.constant 0 : i32
    %c0_i32_0 = arith.constant 0 : i32
    %c0_i32_1 = arith.constant 0 : i32
    return %c0_i32, %c0_i32_0 : i32, i32
  }
  func.func @transform_3(%arg0: i32) -> (i32, i32) {
    %c0_i32 = arith.constant 0 : i32
    %c0_i32_0 = arith.constant 0 : i32
    %c0_i32_1 = arith.constant 0 : i32
    return %c0_i32, %c0_i32_0 : i32, i32
  }
  func.func @transform_4(%arg0: i32) -> (i32, i32) {
    %c0_i32 = arith.constant 0 : i32
    %c0_i32_0 = arith.constant 0 : i32
    %c0_i32_1 = arith.constant 0 : i32
    return %c0_i32, %c0_i32_0 : i32, i32
  }
  func.func @transform_5(%arg0: i32) -> (i32, i32) {
    %c0_i32 = arith.constant 0 : i32
    %c0_i32_0 = arith.constant 0 : i32
    %c0_i32_1 = arith.constant 0 : i32
    return %c0_i32, %c0_i32_0 : i32, i32
  }
  func.func @transform_6(%arg0: i32) -> (i32, i32) {
    %c0_i32 = arith.constant 0 : i32
    %c0_i32_0 = arith.constant 0 : i32
    %c0_i32_1 = arith.constant 0 : i32
    return %c0_i32, %c0_i32_0 : i32, i32
  }
  func.func @transform_7(%arg0: i32) -> (i32, i32) {
    %c0_i32 = arith.constant 0 : i32
    %c0_i32_0 = arith.constant 0 : i32
    %c0_i32_1 = arith.constant 0 : i32
    return %c0_i32, %c0_i32_0 : i32, i32
  }
  func.func @transform_8(%arg0: i32) -> (i32, i32) {
    %c0_i32 = arith.constant 0 : i32
    %c0_i32_0 = arith.constant 0 : i32
    return %c0_i32, %arg0 : i32, i32
  }
  func.func @transform_9(%arg0: i32) -> (i32, i32) {
    %c0_i32 = arith.constant 0 : i32
    %c0_i32_0 = arith.constant 0 : i32
    return %c0_i32, %arg0 : i32, i32
  }
}

</mosaic_0001>

<llo_original>
// kernel: tpu_custom_call.1
$region0: #{tpu_custom_call.1}
  #allocation0 [shape = 'u32[]', space=smem, size = 0x4, offset = 0x4, fixed_abs, tag = 'smem constant byte address 0x4 - core index']
  #allocation1 [shape = 'u32[144,128]{1,0:T(1,128)}', space=vmem, size = 0x12000, scoped, tag = 'internal scratch']
  %s0 = inlined_call_operand.vmem [shape: f32[8,256], index: 0, kind: input, shape index: {}]
  %s1 = inlined_call_operand.hbm [shape: f32[1,256], index: 1, kind: input, shape index: {}, may-alias: {1,9}]
  %s2 = inlined_call_operand.vmem [shape: f32[64,4], index: 2, kind: input, shape index: {}]
  %s3 = inlined_call_operand.vmem [shape: f32[64,1], index: 3, kind: input, shape index: {}]
  %s4 = inlined_call_operand.vmem [shape: f32[64,64], index: 4, kind: input, shape index: {}]
  %s5 = inlined_call_operand.vmem [shape: f32[64,1], index: 5, kind: input, shape index: {}]
  %s6 = inlined_call_operand.vmem [shape: f32[8,64], index: 6, kind: input, shape index: {}]
  %s7 = inlined_call_operand.vmem [shape: f32[8,1], index: 7, kind: input, shape index: {}]
  %s8 = inlined_call_operand.hbm [shape: f32[8,256], index: 8, kind: output, shape index: {0}]
  %s9 = inlined_call_operand.hbm [shape: f32[1,256], index: 9, kind: output, shape index: {1}, may-alias: {1,9}]
  %10 = xla_tuple %s8, %s9
  %s11 = sld [smem:[#allocation0]]
  $region77: #{tpu_custom_call.1} parent=0
    _
  %s13 = ssub.s32 1, %s11
  %s14 = scalar_select 0, %s13, %s11
  $region1: #{tpu_custom_call.1} parent=0
    #allocation2 [shape = 'u8[1024]{0}', space=vmem, size = 0x400, scoped, tag = 'input window, operand 1']
    #allocation3 [shape = 's32[2]{0}', space=sflag, size = 0x8, scoped, tag = 'scoped memory for tpu_custom_call.1']
    #allocation4 [shape = 's32[2]{0}', space=sflag, size = 0x8, scoped, tag = 'scoped memory for tpu_custom_call.1']
    #allocation5 [shape = 'u8[8192]{0}', space=vmem, size = 0x2000, scoped, tag = 'output window, operand 0']
    #allocation6 [shape = 'u8[1024]{0}', space=vmem, size = 0x400, scoped, tag = 'output window, operand 1']
    #allocation7 [shape = 's32[2]{0}', space=sflag, size = 0x8, scoped, tag = 'scoped memory for tpu_custom_call.1']
    %15 = vsyncpa [#allocation3], 0
    %s16 = scalar_lea.sflag [#allocation3], 1
    %17 = vsyncpa %s16, 0
    %18 = vsyncpa [#allocation4], 0
    %s19 = scalar_lea.sflag [#allocation4], 1
    %20 = vsyncpa %s19, 0
    %21 = vsyncpa [#allocation7], 0
    %s22 = scalar_lea.sflag [#allocation7], 1
    %23 = vsyncpa %s22, 0
    loop: start=0, step=1, limit=4
    $region2: #{tpu_custom_call.1} parent=1 // loop_pre_header
      _
    $region3: #{tpu_custom_call.1} parent=1 // loop_header
      %s25 = sphi 0, %s29
      %p26 = scmp.ge.s32.totalorder %s25, 4
      %s35 = sphi 0, %s37
      %s38 = sphi 0, %s35
      %s39 = sphi 0, %s38
      %s55 = sphi 0, %s39
      %s61 = sphi 0, %s63
      %s64 = sphi 0, %s61
      %s65 = sphi 0, %s64
      %s81 = sphi 0, %s65
      %s85 = sphi 0, %s85
      %s87 = sphi 0, %s85
      %s88 = sphi 0, %s87
      %s102 = sphi 0, %s88
      %s106 = sphi 0, %s106
      %s108 = sphi 0, %s106
      %s109 = sphi 0, %s108
      %s123 = sphi 0, %s109
      %s127 = sphi 0, %s127
      %s129 = sphi 0, %s127
      %s130 = sphi 0, %s129
      %s144 = sphi 0, %s130
      %s148 = sphi 0, %s148
      %s150 = sphi 0, %s148
      %s151 = sphi 0, %s150
      %s165 = sphi 0, %s151
      %s169 = sphi 0, %s169
      %s171 = sphi 0, %s169
      %s172 = sphi 0, %s171
      %s186 = sphi 0, %s172
      %s190 = sphi 0, %s190
      %s192 = sphi 0, %s190
      %s193 = sphi 0, %s192
      %s207 = sphi 0, %s193
      %s213 = sphi 0, %s215
      %s216 = sphi 0, %s213
      %s217 = sphi 0, %s216
      %s233 = sphi 0, %s217
      %s239 = sphi 0, %s241
      %s242 = sphi 0, %s239
      %s243 = sphi 0, %s242
      %s259 = sphi 0, %s243
    $region4: #{tpu_custom_call.1} parent=1 // loop_header_branch
      %28 = sbr.rel (%p26) target = $region8
    $region5: #{tpu_custom_call.1} parent=1 // loop_body
      %s30 = ssub.s32 %s25, 1
      %s31 = ssub.s32 %s25, 2
      %s32 = sadd.s32 %s25, 1
      %s33 = ssub.s32 %s25, %s32
      %p34 = scmp.eq.s32.totalorder %s33, 0
      %s36 = sadd.s32 %s35, 1
      %s37 = scalar_select %p34, %s35, %s36
      %p40 = pneg %p34
      %p41 = scmp.eq.s32.totalorder %s25, 1
      %p42 = por %p40, %p41
      %p43 = scmp.ne.s32.totalorder %s35, %s38
      %p44 = scmp.eq.s32.totalorder %s25, 0
      %p45 = por %p43, %p44
      %p46 = scmp.ne.s32.totalorder %s35, %s38
      %p47 = scmp.eq.s32.totalorder %s30, 1
      %p48 = por %p46, %p47
      %p49 = scmp.ne.s32.totalorder %s38, %s39
      %p50 = scmp.eq.s32.totalorder %s30, 0
      %p51 = por %p49, %p50
      %p52 = scmp.ne.s32.totalorder %s38, %s39
      %p53 = scmp.eq.s32.totalorder %s31, 1
      %p54 = por %p52, %p53
      %p56 = scmp.ne.s32.totalorder %s39, %s55
      %p57 = scmp.eq.s32.totalorder %s31, 0
      %p58 = por %p56, %p57
      %s59 = ssub.s32 %s25, %s32
      %p60 = scmp.eq.s32.totalorder %s59, 0
      %s62 = sadd.s32 %s61, 1
      %s63 = scalar_select %p60, %s61, %s62
      %p66 = pneg %p60
      %p67 = scmp.eq.s32.totalorder %s25, 1
      %p68 = por %p66, %p67
      %p69 = scmp.ne.s32.totalorder %s61, %s64
      %p70 = scmp.eq.s32.totalorder %s25, 0
      %p71 = por %p69, %p70
      %p72 = scmp.ne.s32.totalorder %s61, %s64
      %p73 = scmp.eq.s32.totalorder %s30, 1
      %p74 = por %p72, %p73
      %p75 = scmp.ne.s32.totalorder %s64, %s65
      %p76 = scmp.eq.s32.totalorder %s30, 0
      %p77 = por %p75, %p76
      %p78 = scmp.ne.s32.totalorder %s64, %s65
      %p79 = scmp.eq.s32.totalorder %s31, 1
      %p80 = por %p78, %p79
      %p82 = scmp.ne.s32.totalorder %s65, %s81
      %p83 = scmp.eq.s32.totalorder %s31, 0
      %p84 = por %p82, %p83
      %s86 = sadd.s32 %s85, 1
      %p89 = scmp.eq.s32.totalorder %s25, 1
      %p90 = scmp.ne.s32.totalorder %s85, %s87
      %p91 = scmp.eq.s32.totalorder %s25, 0
      %p92 = por %p90, %p91
      %p93 = scmp.ne.s32.totalorder %s85, %s87
      %p94 = scmp.eq.s32.totalorder %s30, 1
      %p95 = por %p93, %p94
      %p96 = scmp.ne.s32.totalorder %s87, %s88
      %p97 = scmp.eq.s32.totalorder %s30, 0
      %p98 = por %p96, %p97
      %p99 = scmp.ne.s32.totalorder %s87, %s88
      %p100 = scmp.eq.s32.totalorder %s31, 1
      %p101 = por %p99, %p100
      %p103 = scmp.ne.s32.totalorder %s88, %s102
      %p104 = scmp.eq.s32.totalorder %s31, 0
      %p105 = por %p103, %p104
      %s107 = sadd.s32 %s106, 1
      %p110 = scmp.eq.s32.totalorder %s25, 1
      %p111 = scmp.ne.s32.totalorder %s106, %s108
      %p112 = scmp.eq.s32.totalorder %s25, 0
      %p113 = por %p111, %p112
      %p114 = scmp.ne.s32.totalorder %s106, %s108
      %p115 = scmp.eq.s32.totalorder %s30, 1
      %p116 = por %p114, %p115
      %p117 = scmp.ne.s32.totalorder %s108, %s109
      %p118 = scmp.eq.s32.totalorder %s30, 0
      %p119 = por %p117, %p118
      %p120 = scmp.ne.s32.totalorder %s108, %s109
      %p121 = scmp.eq.s32.totalorder %s31, 1
      %p122 = por %p120, %p121
      %p124 = scmp.ne.s32.totalorder %s109, %s123
      %p125 = scmp.eq.s32.totalorder %s31, 0
      %p126 = por %p124, %p125
      %s128 = sadd.s32 %s127, 1
      %p131 = scmp.eq.s32.totalorder %s25, 1
      %p132 = scmp.ne.s32.totalorder %s127, %s129
      %p133 = scmp.eq.s32.totalorder %s25, 0
      %p134 = por %p132, %p133
      %p135 = scmp.ne.s32.totalorder %s127, %s129
      %p136 = scmp.eq.s32.totalorder %s30, 1
      %p137 = por %p135, %p136
      %p138 = scmp.ne.s32.totalorder %s129, %s130
      %p139 = scmp.eq.s32.totalorder %s30, 0
      %p140 = por %p138, %p139
      %p141 = scmp.ne.s32.totalorder %s129, %s130
      %p142 = scmp.eq.s32.totalorder %s31, 1
      %p143 = por %p141, %p142
      %p145 = scmp.ne.s32.totalorder %s130, %s144
      %p146 = scmp.eq.s32.totalorder %s31, 0
      %p147 = por %p145, %p146
      %s149 = sadd.s32 %s148, 1
      %p152 = scmp.eq.s32.totalorder %s25, 1
      %p153 = scmp.ne.s32.totalorder %s148, %s150
      %p154 = scmp.eq.s32.totalorder %s25, 0
      %p155 = por %p153, %p154
      %p156 = scmp.ne.s32.totalorder %s148, %s150
      %p157 = scmp.eq.s32.totalorder %s30, 1
      %p158 = por %p156, %p157
      %p159 = scmp.ne.s32.totalorder %s150, %s151
      %p160 = scmp.eq.s32.totalorder %s30, 0
      %p161 = por %p159, %p160
      %p162 = scmp.ne.s32.totalorder %s150, %s151
      %p163 = scmp.eq.s32.totalorder %s31, 1
      %p164 = por %p162, %p163
      %p166 = scmp.ne.s32.totalorder %s151, %s165
      %p167 = scmp.eq.s32.totalorder %s31, 0
      %p168 = por %p166, %p167
      %s170 = sadd.s32 %s169, 1
      %p173 = scmp.eq.s32.totalorder %s25, 1
      %p174 = scmp.ne.s32.totalorder %s169, %s171
      %p175 = scmp.eq.s32.totalorder %s25, 0
      %p176 = por %p174, %p175
      %p177 = scmp.ne.s32.totalorder %s169, %s171
      %p178 = scmp.eq.s32.totalorder %s30, 1
      %p179 = por %p177, %p178
      %p180 = scmp.ne.s32.totalorder %s171, %s172
      %p181 = scmp.eq.s32.totalorder %s30, 0
      %p182 = por %p180, %p181
      %p183 = scmp.ne.s32.totalorder %s171, %s172
      %p184 = scmp.eq.s32.totalorder %s31, 1
      %p185 = por %p183, %p184
      %p187 = scmp.ne.s32.totalorder %s172, %s186
      %p188 = scmp.eq.s32.totalorder %s31, 0
      %p189 = por %p187, %p188
      %s191 = sadd.s32 %s190, 1
      %p194 = scmp.eq.s32.totalorder %s25, 1
      %p195 = scmp.ne.s32.totalorder %s190, %s192
      %p196 = scmp.eq.s32.totalorder %s25, 0
      %p197 = por %p195, %p196
      %p198 = scmp.ne.s32.totalorder %s190, %s192
      %p199 = scmp.eq.s32.totalorder %s30, 1
      %p200 = por %p198, %p199
      %p201 = scmp.ne.s32.totalorder %s192, %s193
      %p202 = scmp.eq.s32.totalorder %s30, 0
      %p203 = por %p201, %p202
      %p204 = scmp.ne.s32.totalorder %s192, %s193
      %p205 = scmp.eq.s32.totalorder %s31, 1
      %p206 = por %p204, %p205
      %p208 = scmp.ne.s32.totalorder %s193, %s207
      %p209 = scmp.eq.s32.totalorder %s31, 0
      %p210 = por %p208, %p209
      %s211 = ssub.s32 %s25, %s32
      %p212 = scmp.eq.s32.totalorder %s211, 0
      %s214 = sadd.s32 %s213, 1
      %s215 = scalar_select %p212, %s213, %s214
      %p218 = pneg %p212
      %p219 = scmp.eq.s32.totalorder %s25, 1
      %p220 = por %p218, %p219
      %p221 = scmp.ne.s32.totalorder %s213, %s216
      %p222 = scmp.eq.s32.totalorder %s25, 0
      %p223 = por %p221, %p222
      %p224 = scmp.ne.s32.totalorder %s213, %s216
      %p225 = scmp.eq.s32.totalorder %s30, 1
      %p226 = por %p224, %p225
      %p227 = scmp.ne.s32.totalorder %s216, %s217
      %p228 = scmp.eq.s32.totalorder %s30, 0
      %p229 = por %p227, %p228
      %p230 = scmp.ne.s32.totalorder %s216, %s217
      %p231 = scmp.eq.s32.totalorder %s31, 1
      %p232 = por %p230, %p231
      %p234 = scmp.ne.s32.totalorder %s217, %s233
      %p235 = scmp.eq.s32.totalorder %s31, 0
      %p236 = por %p234, %p235
      %s237 = ssub.s32 %s25, %s32
      %p238 = scmp.eq.s32.totalorder %s237, 0
      %s240 = sadd.s32 %s239, 1
      %s241 = scalar_select %p238, %s239, %s240
      %p244 = pneg %p238
      %p245 = scmp.eq.s32.totalorder %s25, 1
      %p246 = por %p244, %p245
      %p247 = scmp.ne.s32.totalorder %s239, %s242
      %p248 = scmp.eq.s32.totalorder %s25, 0
      %p249 = por %p247, %p248
      %p250 = scmp.ne.s32.totalorder %s239, %s242
      %p251 = scmp.eq.s32.totalorder %s30, 1
      %p252 = por %p250, %p251
      %p253 = scmp.ne.s32.totalorder %s242, %s243
      %p254 = scmp.eq.s32.totalorder %s30, 0
      %p255 = por %p253, %p254
      %p256 = scmp.ne.s32.totalorder %s242, %s243
      %p257 = scmp.eq.s32.totalorder %s31, 1
      %p258 = por %p256, %p257
      %p260 = scmp.ne.s32.totalorder %s243, %s259
      %p261 = scmp.eq.s32.totalorder %s31, 0
      %p262 = por %p260, %p261
      %p263 = scmp.le.s32.totalorder 1, %s25
      %p264 = scmp.lt.s32.totalorder %s25, 3
      %p265 = pnand %p263, %p264
      %p266 = pneg %p265
      // Predicated region
      $region9: #{tpu_custom_call.1} parent=5 // pred_check
        _
      $region10: #{tpu_custom_call.1} parent=5 // pred_check_branch
        %268 = sbr.rel (%p265) target = $region12
      $region11: #{tpu_custom_call.1} parent=5 // pred_region
        %s269 = ssub.s32 %s25, 1
        // Predicated region
        $region13: #{tpu_custom_call.1} parent=11 // pred_check
          %p270 = pneg %p98
        $region14: #{tpu_custom_call.1} parent=11 // pred_check_branch
          %272 = sbr.rel (%p270) target = $region16
        $region15: #{tpu_custom_call.1} parent=11 // pred_region
          _
        $region16: #{tpu_custom_call.1} parent=11 // pred_fallthru
          _
        // Predicated region
        $region17: #{tpu_custom_call.1} parent=11 // pred_check
          %p273 = pneg %p119
        $region18: #{tpu_custom_call.1} parent=11 // pred_check_branch
          %275 = sbr.rel (%p273) target = $region20
        $region19: #{tpu_custom_call.1} parent=11 // pred_region
          _
        $region20: #{tpu_custom_call.1} parent=11 // pred_fallthru
          _
        // Predicated region
        $region21: #{tpu_custom_call.1} parent=11 // pred_check
          %p276 = pneg %p140
        $region22: #{tpu_custom_call.1} parent=11 // pred_check_branch
          %278 = sbr.rel (%p276) target = $region24
        $region23: #{tpu_custom_call.1} parent=11 // pred_region
          _
        $region24: #{tpu_custom_call.1} parent=11 // pred_fallthru
          _
        // Predicated region
        $region25: #{tpu_custom_call.1} parent=11 // pred_check
          %p279 = pneg %p161
        $region26: #{tpu_custom_call.1} parent=11 // pred_check_branch
          %281 = sbr.rel (%p279) target = $region28
        $region27: #{tpu_custom_call.1} parent=11 // pred_region
          _
        $region28: #{tpu_custom_call.1} parent=11 // pred_fallthru
          _
        // Predicated region
        $region29: #{tpu_custom_call.1} parent=11 // pred_check
          %p282 = pneg %p182
        $region30: #{tpu_custom_call.1} parent=11 // pred_check_branch
          %284 = sbr.rel (%p282) target = $region32
        $region31: #{tpu_custom_call.1} parent=11 // pred_region
          _
        $region32: #{tpu_custom_call.1} parent=11 // pred_fallthru
          _
        // Predicated region
        $region33: #{tpu_custom_call.1} parent=11 // pred_check
          %p285 = pneg %p203
        $region34: #{tpu_custom_call.1} parent=11 // pred_check_branch
          %287 = sbr.rel (%p285) target = $region36
        $region35: #{tpu_custom_call.1} parent=11 // pred_region
          _
        $region36: #{tpu_custom_call.1} parent=11 // pred_fallthru
          _
      $region12: #{tpu_custom_call.1} parent=5 // pred_fallthru
        _
      %p288 = scmp.lt.s32.totalorder %s25, 2
      // Predicated region
      $region37: #{tpu_custom_call.1} parent=5 // pred_check
        %p289 = pneg %p288
      $region38: #{tpu_custom_call.1} parent=5 // pred_check_branch
        %291 = sbr.rel (%p289) target = $region40
      $region39: #{tpu_custom_call.1} parent=5 // pred_region
        // Predicated region
        $region41: #{tpu_custom_call.1} parent=39 // pred_check
          %p292 = pneg %p45
        $region42: #{tpu_custom_call.1} parent=39 // pred_check_branch
          %294 = sbr.rel (%p292) target = $region44
        $region43: #{tpu_custom_call.1} parent=39 // pred_region
          %p295 = scmp.lt.s32.totalorder %s25, 1
          %s296 = scalar_select %p295, %s25, 1
          %s297 = smul.addr %s296, 8
          %s298 = scalar_lea.vmem %s0, %s297
        $region44: #{tpu_custom_call.1} parent=39 // pred_fallthru
          _
        // Predicated region
        $region45: #{tpu_custom_call.1} parent=39 // pred_check
          %p299 = pneg %p71
        $region46: #{tpu_custom_call.1} parent=39 // pred_check_branch
          %301 = sbr.rel (%p299) target = $region48
        $region47: #{tpu_custom_call.1} parent=39 // pred_region
          %s302 = sand.u32 %s61, 1
          %s303 = scalar_lea.sflag [#allocation3], %s302
          %s304 = sand.u32 %s61, 1
          %s305 = scalar_lea.vmem [#allocation2], %s304
          %s307 = ssub.s32 16, 16
          %308 = vsyncadd %s303, %s307
          %s309 = smul.addr %s25, 16
          %s310 = scalar_lea.hbm %s1, %s309
          %s312 = sshll.u32 %s305, 4
          %s313 = int_to_ptr.vmem [resolvable:$true] %s312
          %315 = dma.hbm_to_vmem [thread:$0]  %s310, 16, %s313, %s303
        $region48: #{tpu_custom_call.1} parent=39 // pred_fallthru
          _
      $region40: #{tpu_custom_call.1} parent=5 // pred_fallthru
        _
      %p316 = scmp.le.s32.totalorder 1, %s25
      %p317 = scmp.lt.s32.totalorder %s25, 3
      %p318 = pnand %p316, %p317
      %p319 = pneg %p318
      // Predicated region
      $region49: #{tpu_custom_call.1} parent=5 // pred_check
        _
      $region50: #{tpu_custom_call.1} parent=5 // pred_check_branch
        %321 = sbr.rel (%p318) target = $region52
      $region51: #{tpu_custom_call.1} parent=5 // pred_region
        %s322 = ssub.s32 %s25, 1
        %s323 = sand.u32 %s64, 1
        %s324 = scalar_lea.sflag [#allocation3], %s323
        %s325 = sand.u32 %s64, 1
        %s326 = scalar_lea.vmem [#allocation2], %s325
        // Predicated region
        $region53: #{tpu_custom_call.1} parent=51 // pred_check
          %p327 = pneg %p77
        $region54: #{tpu_custom_call.1} parent=51 // pred_check_branch
          %329 = sbr.rel (%p327) target = $region56
        $region55: #{tpu_custom_call.1} parent=51 // pred_region
          %330 = dma.done %s324, 16
        $region56: #{tpu_custom_call.1} parent=51 // pred_fallthru
          _
        %p331 = scmp.lt.s32.totalorder %s30, 1
        %s332 = scalar_select %p331, %s30, 1
        %s333 = smul.addr %s332, 8
        %s334 = scalar_lea.vmem %s0, %s333
        %p335 = pneg %p51
        %p336 = pneg %p48
        %s337 = sand.u32 %s64, 1
        %s338 = scalar_lea.sflag [#allocation3], %s337
        %s339 = sand.u32 %s64, 1
        %s340 = scalar_lea.vmem [#allocation2], %s339
        %p341 = pneg %p77
        %p342 = pneg %p74
        %p343 = pneg %p98
        %p344 = pneg %p95
        %p345 = pneg %p119
        %p346 = pneg %p116
        %p347 = pneg %p140
        %p348 = pneg %p137
        %p349 = pneg %p161
        %p350 = pneg %p158
        %p351 = pneg %p182
        %p352 = pneg %p179
        %p353 = pneg %p203
        %p354 = pneg %p200
        %p355 = pneg %p229
        %p356 = pneg %p226
        %s357 = sand.u32 %s216, 1
        %s358 = scalar_lea.sflag [#allocation4], %s357
        %s359 = sand.u32 %s216, 1
        %s360 = smul.addr %s359, 8
        %s361 = scalar_lea.vmem [#allocation5], %s360
        %p362 = pneg %p255
        %p363 = pneg %p252
        %s364 = sand.u32 %s242, 1
        %s365 = scalar_lea.sflag [#allocation7], %s364
        %s366 = sand.u32 %s242, 1
        %s367 = scalar_lea.vmem [#allocation6], %s366
        %p368 = scmp.lt.s32.totalorder %s30, 1
        %s369 = scalar_select %p368, %s30, 1
        %s370 = smul.addr %s369, 8
        %s371 = scalar_lea.vmem %s0, %s370
        %v372 = vld [vmem:[%s371] sm:$0xff]
        %v373 = vld [vmem:[%s2] sm:$0xff]
        %v374 = vld [vmem:[%s2 + $0x8] sm:$0xff]
        %v375 = vld [vmem:[%s2 + $0x10] sm:$0xff]
        %v376 = vld [vmem:[%s2 + $0x18] sm:$0xff]
        %v377 = vld [vmem:[%s2 + $0x20] sm:$0xff]
        %v378 = vld [vmem:[%s2 + $0x28] sm:$0xff]
        %v379 = vld [vmem:[%s2 + $0x30] sm:$0xff]
        %v380 = vld [vmem:[%s2 + $0x38] sm:$0xff]
        %v381 = vld [vmem:[%s3] sm:$0xff]
        %v382 = vld [vmem:[%s3 + $0x8] sm:$0xff]
        %v383 = vld [vmem:[%s3 + $0x10] sm:$0xff]
        %v384 = vld [vmem:[%s3 + $0x18] sm:$0xff]
        %v385 = vld [vmem:[%s3 + $0x20] sm:$0xff]
        %v386 = vld [vmem:[%s3 + $0x28] sm:$0xff]
        %v387 = vld [vmem:[%s3 + $0x30] sm:$0xff]
        %v388 = vld [vmem:[%s3 + $0x38] sm:$0xff]
        %390 = vset.pattern.permute.xlu0 0
        %391 = vperm.xlu0 %390, %v381
        %v392 = vpop.permute.xlu0 %391
        %395 = vset.pattern.permute.xlu0 0
        %396 = vperm.xlu0 %395, %v382
        %v397 = vpop.permute.xlu0 %396
        %400 = vset.pattern.permute.xlu0 0
        %401 = vperm.xlu0 %400, %v383
        %v402 = vpop.permute.xlu0 %401
        %405 = vset.pattern.permute.xlu0 0
        %406 = vperm.xlu0 %405, %v384
        %v407 = vpop.permute.xlu0 %406
        %410 = vset.pattern.permute.xlu0 0
        %411 = vperm.xlu0 %410, %v385
        %v412 = vpop.permute.xlu0 %411
        %415 = vset.pattern.permute.xlu0 0
        %416 = vperm.xlu0 %415, %v386
        %v417 = vpop.permute.xlu0 %416
        %420 = vset.pattern.permute.xlu0 0
        %421 = vperm.xlu0 %420, %v387
        %v422 = vpop.permute.xlu0 %421
        %425 = vset.pattern.permute.xlu0 0
        %426 = vperm.xlu0 %425, %v388
        %v427 = vpop.permute.xlu0 %426
        %vm429 = vcmask 31744
        %v431 = vsel %vm429, %v373, 0
        %v434 = vsel %vm429, %v374, 0
        %v437 = vsel %vm429, %v375, 0
        %v440 = vsel %vm429, %v376, 0
        %v443 = vsel %vm429, %v377, 0
        %v446 = vsel %vm429, %v378, 0
        %v449 = vsel %vm429, %v379, 0
        %v452 = vsel %vm429, %v380, 0
        %vm454 = vcmask 1043456
        %v456 = vsel %vm454, %v372, 0
        %458 = vmatprep.subr.mxu0 0.0
        %459 = vmatpush1.msra.mxu0 %v456
        %460 = vmatprep.subr.mxu0 0.0
        %461 = vmatpush1.msra.mxu0 0.0
        %462 = vmatprep.subr.mxu0 0.0
        %463 = vmatpush1.msra.mxu0 0.0
        %464 = vmatprep.subr.mxu0 0.0
        %465 = vmatpush1.msra.mxu0 0.0
        %466 = vmatprep.subr.mxu0 0.0
        %467 = vmatpush1.msra.mxu0 0.0
        %468 = vmatprep.subr.mxu0 0.0
        %469 = vmatpush1.msra.mxu0 0.0
        %470 = vmatprep.subr.mxu0 0.0
        %471 = vmatpush1.msra.mxu0 0.0
        %472 = vmatprep.subr.mxu0 0.0
        %473 = vmatpush1.msra.mxu0 0.0
        %474 = vmatprep.subr.mxu0 0.0
        %475 = vmatpush1.msra.mxu0 0.0
        %476 = vmatprep.subr.mxu0 0.0
        %477 = vmatpush1.msra.mxu0 0.0
        %478 = vmatprep.subr.mxu0 0.0
        %479 = vmatpush1.msra.mxu0 0.0
        %480 = vmatprep.subr.mxu0 0.0
        %481 = vmatpush1.msra.mxu0 0.0
        %482 = vmatprep.subr.mxu0 0.0
        %483 = vmatpush1.msra.mxu0 0.0
        %484 = vmatprep.subr.mxu0 0.0
        %485 = vmatpush1.msra.mxu0 0.0
        %486 = vmatprep.subr.mxu0 0.0
        %487 = vmatpush1.msra.mxu0 0.0
        %488 = vmatprep.subr.mxu0 0.0
        %489 = vmatpush1.msra.mxu0 0.0
        %490 = vmatprep.subr.mxu0 0.0
        %491 = vmatpush1.msra.mxu0 0.0
        %492 = vmatprep.subr.mxu0 0.0
        %493 = vmatpush1.msra.mxu0 0.0
        %494 = vmatprep.subr.mxu0 0.0
        %495 = vmatpush1.msra.mxu0 0.0
        %496 = vmatprep.subr.mxu0 0.0
        %497 = vmatpush1.msra.mxu0 0.0
        %498 = vmatprep.subr.mxu0 0.0
        %499 = vmatpush1.msra.mxu0 0.0
        %500 = vmatprep.subr.mxu0 0.0
        %501 = vmatpush1.msra.mxu0 0.0
        %502 = vmatprep.subr.mxu0 0.0
        %503 = vmatpush1.msra.mxu0 0.0
        %504 = vmatprep.subr.mxu0 0.0
        %505 = vmatpush1.msra.mxu0 0.0
        %506 = vmatprep.subr.mxu0 0.0
        %507 = vmatpush1.msra.mxu0 0.0
        %508 = vmatprep.subr.mxu0 0.0
        %509 = vmatpush1.msra.mxu0 0.0
        %510 = vmatprep.subr.mxu0 0.0
        %511 = vmatpush1.msra.mxu0 0.0
        %512 = vmatprep.subr.mxu0 0.0
        %513 = vmatpush1.msra.mxu0 0.0
        %514 = vmatprep.subr.mxu0 0.0
        %515 = vmatpush1.msra.mxu0 0.0
        %516 = vmatprep.subr.mxu0 0.0
        %517 = vmatpush1.msra.mxu0 0.0
        %518 = vmatprep.subr.mxu0 0.0
        %519 = vmatpush1.msra.mxu0 0.0
        %520 = vmatprep.subr.mxu0 0.0
        %521 = vmatpush1.msra.mxu0 0.0
        %522 = vmatprep.mubr.f32.mxu0 0.0
        %523 = vmatmul.mubr.f32.gmra.mrb[0].mxu0 %v431
        %v524 = vpop.f32.mrb[0].mxu0
        %v525 = vadd.f32 %v392, %v524
        %v526 = vpop.f32.mrb[0].mxu0
        %527 = vmatprep.mubr.f32.mxu0 0.0
        %528 = vmatmul.mubr.f32.gmra.mrb[0].mxu0 %v434
        %v529 = vpop.f32.mrb[0].mxu0
        %v530 = vadd.f32 %v397, %v529
        %v531 = vpop.f32.mrb[0].mxu0
        %532 = vmatprep.mubr.f32.mxu0 0.0
        %533 = vmatmul.mubr.f32.gmra.mrb[0].mxu0 %v437
        %v534 = vpop.f32.mrb[0].mxu0
        %v535 = vadd.f32 %v402, %v534
        %v536 = vpop.f32.mrb[0].mxu0
        %537 = vmatprep.mubr.f32.mxu0 0.0
        %538 = vmatmul.mubr.f32.gmra.mrb[0].mxu0 %v440
        %v539 = vpop.f32.mrb[0].mxu0
        %v540 = vadd.f32 %v407, %v539
        %v541 = vpop.f32.mrb[0].mxu0
        %542 = vmatprep.mubr.f32.mxu0 0.0
        %543 = vmatmul.mubr.f32.gmra.mrb[0].mxu0 %v443
        %v544 = vpop.f32.mrb[0].mxu0
        %v545 = vadd.f32 %v412, %v544
        %v546 = vpop.f32.mrb[0].mxu0
        %547 = vmatprep.mubr.f32.mxu0 0.0
        %548 = vmatmul.mubr.f32.gmra.mrb[0].mxu0 %v446
        %v549 = vpop.f32.mrb[0].mxu0
        %v550 = vadd.f32 %v417, %v549
        %v551 = vpop.f32.mrb[0].mxu0
        %552 = vmatprep.mubr.f32.mxu0 0.0
        %553 = vmatmul.mubr.f32.gmra.mrb[0].mxu0 %v449
        %v554 = vpop.f32.mrb[0].mxu0
        %v555 = vadd.f32 %v422, %v554
        %v556 = vpop.f32.mrb[0].mxu0
        %557 = vmatprep.mubr.f32.mxu0 0.0
        %558 = vmatmul.mubr.f32.gmra.mrb[0].mxu0 %v452
        %v559 = vpop.f32.mrb[0].mxu0
        %v560 = vadd.f32 %v427, %v559
        %v561 = vpop.f32.mrb[0].mxu0
        %562 = vdwg.mxu0
        %v563 = vmax.f32 %v525, 0.0
        %v564 = vmax.f32 %v530, 0.0
        %v565 = vmax.f32 %v535, 0.0
        %v566 = vmax.f32 %v540, 0.0
        %v567 = vmax.f32 %v545, 0.0
        %v568 = vmax.f32 %v550, 0.0
        %v569 = vmax.f32 %v555, 0.0
        %v570 = vmax.f32 %v560, 0.0
        %v571 = vld [vmem:[%s4] sm:$0xff]
        %v572 = vld [vmem:[%s4 + $0x8] sm:$0xff]
        %v573 = vld [vmem:[%s4 + $0x10] sm:$0xff]
        %v574 = vld [vmem:[%s4 + $0x18] sm:$0xff]
        %v575 = vld [vmem:[%s4 + $0x20] sm:$0xff]
        %v576 = vld [vmem:[%s4 + $0x28] sm:$0xff]
        %v577 = vld [vmem:[%s4 + $0x30] sm:$0xff]
        %v578 = vld [vmem:[%s4 + $0x38] sm:$0xff]
        %v579 = vld [vmem:[%s5] sm:$0xff]
        %v580 = vld [vmem:[%s5 + $0x8] sm:$0xff]
        %v581 = vld [vmem:[%s5 + $0x10] sm:$0xff]
        %v582 = vld [vmem:[%s5 + $0x18] sm:$0xff]
        %v583 = vld [vmem:[%s5 + $0x20] sm:$0xff]
        %v584 = vld [vmem:[%s5 + $0x28] sm:$0xff]
        %v585 = vld [vmem:[%s5 + $0x30] sm:$0xff]
        %v586 = vld [vmem:[%s5 + $0x38] sm:$0xff]
        %588 = vset.pattern.permute.xlu0 0
        %589 = vperm.xlu0 %588, %v579
        %v590 = vpop.permute.xlu0 %589
        %593 = vset.pattern.permute.xlu0 0
        %594 = vperm.xlu0 %593, %v580
        %v595 = vpop.permute.xlu0 %594
        %598 = vset.pattern.permute.xlu0 0
        %599 = vperm.xlu0 %598, %v581
        %v600 = vpop.permute.xlu0 %599
        %603 = vset.pattern.permute.xlu0 0
        %604 = vperm.xlu0 %603, %v582
        %v605 = vpop.permute.xlu0 %604
        %608 = vset.pattern.permute.xlu0 0
        %609 = vperm.xlu0 %608, %v583
        %v610 = vpop.permute.xlu0 %609
        %613 = vset.pattern.permute.xlu0 0
        %614 = vperm.xlu0 %613, %v584
        %v615 = vpop.permute.xlu0 %614
        %618 = vset.pattern.permute.xlu0 0
        %619 = vperm.xlu0 %618, %v585
        %v620 = vpop.permute.xlu0 %619
        %623 = vset.pattern.permute.xlu0 0
        %624 = vperm.xlu0 %623, %v586
        %v625 = vpop.permute.xlu0 %624
        %vm627 = vcmask 523264
        %v629 = vsel %vm627, %v571, 0
        %v632 = vsel %vm627, %v572, 0
        %v635 = vsel %vm627, %v573, 0
        %v638 = vsel %vm627, %v574, 0
        %v641 = vsel %vm627, %v575, 0
        %v644 = vsel %vm627, %v576, 0
        %v647 = vsel %vm627, %v577, 0
        %v650 = vsel %vm627, %v578, 0
        %652 = vmatprep.subr.mxu0 0.0
        %653 = vmatpush1.msra.mxu0 %v563
        %654 = vmatprep.subr.mxu0 0.0
        %655 = vmatpush1.msra.mxu0 %v564
        %656 = vmatprep.subr.mxu0 0.0
        %657 = vmatpush1.msra.mxu0 %v565
        %658 = vmatprep.subr.mxu0 0.0
        %659 = vmatpush1.msra.mxu0 %v566
        %660 = vmatprep.subr.mxu0 0.0
        %661 = vmatpush1.msra.mxu0 %v567
        %662 = vmatprep.subr.mxu0 0.0
        %663 = vmatpush1.msra.mxu0 %v568
        %664 = vmatprep.subr.mxu0 0.0
        %665 = vmatpush1.msra.mxu0 %v569
        %666 = vmatprep.subr.mxu0 0.0
        %667 = vmatpush1.msra.mxu0 %v570
        %668 = vmatprep.subr.mxu0 0.0
        %669 = vmatpush1.msra.mxu0 0.0
        %670 = vmatprep.subr.mxu0 0.0
        %671 = vmatpush1.msra.mxu0 0.0
        %672 = vmatprep.subr.mxu0 0.0
        %673 = vmatpush1.msra.mxu0 0.0
        %674 = vmatprep.subr.mxu0 0.0
        %675 = vmatpush1.msra.mxu0 0.0
        %676 = vmatprep.subr.mxu0 0.0
        %677 = vmatpush1.msra.mxu0 0.0
        %678 = vmatprep.subr.mxu0 0.0
        %679 = vmatpush1.msra.mxu0 0.0
        %680 = vmatprep.subr.mxu0 0.0
        %681 = vmatpush1.msra.mxu0 0.0
        %682 = vmatprep.subr.mxu0 0.0
        %683 = vmatpush1.msra.mxu0 0.0
        %684 = vmatprep.subr.mxu0 0.0
        %685 = vmatpush1.msra.mxu0 0.0
        %686 = vmatprep.subr.mxu0 0.0
        %687 = vmatpush1.msra.mxu0 0.0
        %688 = vmatprep.subr.mxu0 0.0
        %689 = vmatpush1.msra.mxu0 0.0
        %690 = vmatprep.subr.mxu0 0.0
        %691 = vmatpush1.msra.mxu0 0.0
        %692 = vmatprep.subr.mxu0 0.0
        %693 = vmatpush1.msra.mxu0 0.0
        %694 = vmatprep.subr.mxu0 0.0
        %695 = vmatpush1.msra.mxu0 0.0
        %696 = vmatprep.subr.mxu0 0.0
        %697 = vmatpush1.msra.mxu0 0.0
        %698 = vmatprep.subr.mxu0 0.0
        %699 = vmatpush1.msra.mxu0 0.0
        %700 = vmatprep.subr.mxu0 0.0
        %701 = vmatpush1.msra.mxu0 0.0
        %702 = vmatprep.subr.mxu0 0.0
        %703 = vmatpush1.msra.mxu0 0.0
        %704 = vmatprep.subr.mxu0 0.0
        %705 = vmatpush1.msra.mxu0 0.0
        %706 = vmatprep.subr.mxu0 0.0
        %707 = vmatpush1.msra.mxu0 0.0
        %708 = vmatprep.subr.mxu0 0.0
        %709 = vmatpush1.msra.mxu0 0.0
        %710 = vmatprep.subr.mxu0 0.0
        %711 = vmatpush1.msra.mxu0 0.0
        %712 = vmatprep.subr.mxu0 0.0
        %713 = vmatpush1.msra.mxu0 0.0
        %714 = vmatprep.subr.mxu0 0.0
        %715 = vmatpush1.msra.mxu0 0.0
        %716 = vmatprep.mubr.f32.mxu0 0.0
        %717 = vmatmul.mubr.f32.gmra.mrb[0].mxu0 %v629
        %v718 = vpop.f32.mrb[0].mxu0
        %v719 = vadd.f32 %v590, %v718
        %v720 = vpop.f32.mrb[0].mxu0
        %721 = vmatprep.mubr.f32.mxu0 0.0
        %722 = vmatmul.mubr.f32.gmra.mrb[0].mxu0 %v632
        %v723 = vpop.f32.mrb[0].mxu0
        %v724 = vadd.f32 %v595, %v723
        %v725 = vpop.f32.mrb[0].mxu0
        %726 = vmatprep.mubr.f32.mxu0 0.0
        %727 = vmatmul.mubr.f32.gmra.mrb[0].mxu0 %v635
        %v728 = vpop.f32.mrb[0].mxu0
        %v729 = vadd.f32 %v600, %v728
        %v730 = vpop.f32.mrb[0].mxu0
        %731 = vmatprep.mubr.f32.mxu0 0.0
        %732 = vmatmul.mubr.f32.gmra.mrb[0].mxu0 %v638
        %v733 = vpop.f32.mrb[0].mxu0
        %v734 = vadd.f32 %v605, %v733
        %v735 = vpop.f32.mrb[0].mxu0
        %736 = vmatprep.mubr.f32.mxu0 0.0
        %737 = vmatmul.mubr.f32.gmra.mrb[0].mxu0 %v641
        %v738 = vpop.f32.mrb[0].mxu0
        %v739 = vadd.f32 %v610, %v738
        %v740 = vpop.f32.mrb[0].mxu0
        %741 = vmatprep.mubr.f32.mxu0 0.0
        %742 = vmatmul.mubr.f32.gmra.mrb[0].mxu0 %v644
        %v743 = vpop.f32.mrb[0].mxu0
        %v744 = vadd.f32 %v615, %v743
        %v745 = vpop.f32.mrb[0].mxu0
        %746 = vmatprep.mubr.f32.mxu0 0.0
        %747 = vmatmul.mubr.f32.gmra.mrb[0].mxu0 %v647
        %v748 = vpop.f32.mrb[0].mxu0
        %v749 = vadd.f32 %v620, %v748
        %v750 = vpop.f32.mrb[0].mxu0
        %751 = vmatprep.mubr.f32.mxu0 0.0
        %752 = vmatmul.mubr.f32.gmra.mrb[0].mxu0 %v650
        %v753 = vpop.f32.mrb[0].mxu0
        %v754 = vadd.f32 %v625, %v753
        %v755 = vpop.f32.mrb[0].mxu0
        %756 = vdwg.mxu0
        %v757 = vmax.f32 %v719, 0.0
        %v758 = vmax.f32 %v724, 0.0
        %v759 = vmax.f32 %v729, 0.0
        %v760 = vmax.f32 %v734, 0.0
        %v761 = vmax.f32 %v739, 0.0
        %v762 = vmax.f32 %v744, 0.0
        %v763 = vmax.f32 %v749, 0.0
        %v764 = vmax.f32 %v754, 0.0
        %v765 = vld [vmem:[%s6] sm:$0xff]
        %v766 = vld [vmem:[%s7] sm:$0xff]
        %768 = vset.pattern.permute.xlu0 0
        %769 = vperm.xlu0 %768, %v766
        %v770 = vpop.permute.xlu0 %769
        %v773 = vsel %vm627, %v765, 0
        %775 = vmatprep.subr.mxu0 0.0
        %776 = vmatpush1.msra.mxu0 %v757
        %777 = vmatprep.subr.mxu0 0.0
        %778 = vmatpush1.msra.mxu0 %v758
        %779 = vmatprep.subr.mxu0 0.0
        %780 = vmatpush1.msra.mxu0 %v759
        %781 = vmatprep.subr.mxu0 0.0
        %782 = vmatpush1.msra.mxu0 %v760
        %783 = vmatprep.subr.mxu0 0.0
        %784 = vmatpush1.msra.mxu0 %v761
        %785 = vmatprep.subr.mxu0 0.0
        %786 = vmatpush1.msra.mxu0 %v762
        %787 = vmatprep.subr.mxu0 0.0
        %788 = vmatpush1.msra.mxu0 %v763
        %789 = vmatprep.subr.mxu0 0.0
        %790 = vmatpush1.msra.mxu0 %v764
        %791 = vmatprep.subr.mxu0 0.0
        %792 = vmatpush1.msra.mxu0 0.0
        %793 = vmatprep.subr.mxu0 0.0
        %794 = vmatpush1.msra.mxu0 0.0
        %795 = vmatprep.subr.mxu0 0.0
        %796 = vmatpush1.msra.mxu0 0.0
        %797 = vmatprep.subr.mxu0 0.0
        %798 = vmatpush1.msra.mxu0 0.0
        %799 = vmatprep.subr.mxu0 0.0
        %800 = vmatpush1.msra.mxu0 0.0
        %801 = vmatprep.subr.mxu0 0.0
        %802 = vmatpush1.msra.mxu0 0.0
        %803 = vmatprep.subr.mxu0 0.0
        %804 = vmatpush1.msra.mxu0 0.0
        %805 = vmatprep.subr.mxu0 0.0
        %806 = vmatpush1.msra.mxu0 0.0
        %807 = vmatprep.subr.mxu0 0.0
        %808 = vmatpush1.msra.mxu0 0.0
        %809 = vmatprep.subr.mxu0 0.0
        %810 = vmatpush1.msra.mxu0 0.0
        %811 = vmatprep.subr.mxu0 0.0
        %812 = vmatpush1.msra.mxu0 0.0
        %813 = vmatprep.subr.mxu0 0.0
        %814 = vmatpush1.msra.mxu0 0.0
        %815 = vmatprep.subr.mxu0 0.0
        %816 = vmatpush1.msra.mxu0 0.0
        %817 = vmatprep.subr.mxu0 0.0
        %818 = vmatpush1.msra.mxu0 0.0
        %819 = vmatprep.subr.mxu0 0.0
        %820 = vmatpush1.msra.mxu0 0.0
        %821 = vmatprep.subr.mxu0 0.0
        %822 = vmatpush1.msra.mxu0 0.0
        %823 = vmatprep.subr.mxu0 0.0
        %824 = vmatpush1.msra.mxu0 0.0
        %825 = vmatprep.subr.mxu0 0.0
        %826 = vmatpush1.msra.mxu0 0.0
        %827 = vmatprep.subr.mxu0 0.0
        %828 = vmatpush1.msra.mxu0 0.0
        %829 = vmatprep.subr.mxu0 0.0
        %830 = vmatpush1.msra.mxu0 0.0
        %831 = vmatprep.subr.mxu0 0.0
        %832 = vmatpush1.msra.mxu0 0.0
        %833 = vmatprep.subr.mxu0 0.0
        %834 = vmatpush1.msra.mxu0 0.0
        %835 = vmatprep.subr.mxu0 0.0
        %836 = vmatpush1.msra.mxu0 0.0
        %837 = vmatprep.subr.mxu0 0.0
        %838 = vmatpush1.msra.mxu0 0.0
        %839 = vmatprep.mubr.f32.mxu0 0.0
        %840 = vmatmul.mubr.f32.gmra.mrb[0].mxu0 %v773
        %v841 = vpop.f32.mrb[0].mxu0
        %v842 = vadd.f32 %v770, %v841
        %v843 = vpop.f32.mrb[0].mxu0
        %844 = vdwg.mxu0
        %v845 = vtanh.pop %v842
        %v846 = vadd.f32 %v845, 1.0
        %v847 = vlog2.pop %v846
        %v848 = vmul.f32 %v847, 0.6931472
        %v849 = vsel %vm454, %v848, 0.0
        %v850 = vrot.slane %v849, 4
        %v851 = vadd.f32 %v849, %v850
        %v852 = vrot.slane %v851, 2
        %v853 = vadd.f32 %v851, %v852
        %v854 = vrot.slane %v853, 1
        %v855 = vadd.f32 %v853, %v854
        %v857 = vrot.slane %v846, 4
        %v859 = vmul.f32 %v372, %v857
        %v860 = vadd.f32 %v859, %v842
        %861 = vst [vmem:[%s361] sm:$0xf] %v372
        %862 = vst [vmem:[%s361] sm:$0xf0] %v860
        %v863 = vld [vmem:[%s326] sm:$0x1]
        %v864 = vadd.f32 %v863, %v855
        %865 = vst [vmem:[%s367] sm:$0x1] %v864
        %s866 = sand.u32 %s216, 1
        %s867 = scalar_lea.sflag [#allocation4], %s866
        %s868 = sand.u32 %s216, 1
        %s869 = smul.addr %s868, 8
        %s870 = scalar_lea.vmem [#allocation5], %s869
        %s871 = sand.u32 %s242, 1
        %s872 = scalar_lea.sflag [#allocation7], %s871
        %s873 = sand.u32 %s242, 1
        %s874 = scalar_lea.vmem [#allocation6], %s873
        // Predicated region
        $region57: #{tpu_custom_call.1} parent=51 // pred_check
          %p875 = pneg %p226
        $region58: #{tpu_custom_call.1} parent=51 // pred_check_branch
          %877 = sbr.rel (%p875) target = $region60
        $region59: #{tpu_custom_call.1} parent=51 // pred_region
          %s879 = ssub.s32 128, 128
          %880 = vsyncadd %s867, %s879
          %s881 = smul.addr %s30, 128
          %s882 = scalar_lea.hbm %s8, %s881
          %s884 = sshll.u32 %s870, 4
          %s885 = int_to_ptr.vmem [resolvable:$true] %s884
          %887 = dma.vmem_to_hbm [thread:$0]  %s885, 128, %s882, %s867
        $region60: #{tpu_custom_call.1} parent=51 // pred_fallthru
          _
        // Predicated region
        $region61: #{tpu_custom_call.1} parent=51 // pred_check
          %p888 = pneg %p252
        $region62: #{tpu_custom_call.1} parent=51 // pred_check_branch
          %890 = sbr.rel (%p888) target = $region64
        $region63: #{tpu_custom_call.1} parent=51 // pred_region
          %s892 = ssub.s32 16, 16
          %893 = vsyncadd %s872, %s892
          %s894 = smul.addr %s30, 16
          %s895 = scalar_lea.hbm %s9, %s894
          %s897 = sshll.u32 %s874, 4
          %s898 = int_to_ptr.vmem [resolvable:$true] %s897
          %900 = dma.vmem_to_hbm [thread:$0]  %s898, 16, %s895, %s872
        $region64: #{tpu_custom_call.1} parent=51 // pred_fallthru
          _
      $region52: #{tpu_custom_call.1} parent=5 // pred_fallthru
        _
      %p901 = scmp.le.s32.totalorder 2, %s25
      // Predicated region
      $region65: #{tpu_custom_call.1} parent=5 // pred_check
        %p902 = pneg %p901
      $region66: #{tpu_custom_call.1} parent=5 // pred_check_branch
        %904 = sbr.rel (%p902) target = $region68
      $region67: #{tpu_custom_call.1} parent=5 // pred_region
        %s905 = ssub.s32 %s25, 2
        // Predicated region
        $region69: #{tpu_custom_call.1} parent=67 // pred_check
          %p906 = pneg %p232
        $region70: #{tpu_custom_call.1} parent=67 // pred_check_branch
          %908 = sbr.rel (%p906) target = $region72
        $region71: #{tpu_custom_call.1} parent=67 // pred_region
          %s909 = sand.u32 %s217, 1
          %s910 = scalar_lea.sflag [#allocation4], %s909
          %s911 = sand.u32 %s217, 1
          %s912 = smul.addr %s911, 8
          %s913 = scalar_lea.vmem [#allocation5], %s912
          %914 = dma.done %s910, 128
        $region72: #{tpu_custom_call.1} parent=67 // pred_fallthru
          _
        // Predicated region
        $region73: #{tpu_custom_call.1} parent=67 // pred_check
          %p915 = pneg %p258
        $region74: #{tpu_custom_call.1} parent=67 // pred_check_branch
          %917 = sbr.rel (%p915) target = $region76
        $region75: #{tpu_custom_call.1} parent=67 // pred_region
          %s918 = sand.u32 %s243, 1
          %s919 = scalar_lea.sflag [#allocation7], %s918
          %s920 = sand.u32 %s243, 1
          %s921 = scalar_lea.vmem [#allocation6], %s920
          %922 = dma.done %s919, 16
        $region76: #{tpu_custom_call.1} parent=67 // pred_fallthru
          _
      $region68: #{tpu_custom_call.1} parent=5 // pred_fallthru
        _
    $region6: #{tpu_custom_call.1} parent=1 // loop_footer
      %s29 = sadd.s32 1, %s25
    $region7: #{tpu_custom_call.1} parent=1 // loop_footer_branch
      %24 = sbr.rel target = $region3
    $region8: #{tpu_custom_call.1} parent=1 // loop_exit
      _
    %923 = vsyncpa [#allocation3], 1
    %s924 = scalar_lea.sflag [#allocation3], 1
    %925 = vsyncpa %s924, 1
    %926 = vsyncpa [#allocation4], 1
    %s927 = scalar_lea.sflag [#allocation4], 1
    %928 = vsyncpa %s927, 1
    %929 = vsyncpa [#allocation7], 1
    %s930 = scalar_lea.sflag [#allocation7], 1
    %931 = vsyncpa %s930, 1

</llo_original>
